<compile_context>
chip_gen: v7x
topology: tpu7x:2x2x1
jax: 0.10.0
libtpu: 0.0.40
codegen_flags: <defaults>
</compile_context>

<pallas_src>
import functools

import jax
import jax.numpy as jnp
from jax import lax
from jax.experimental import pallas as pl
from jax.experimental.pallas import tpu as pltpu

_LANE = 128
_VMEM_LIMIT = 32 * 1024 * 1024      # grantable on v5e / v6e / v7x
_FUSED_BYTES = 20 * 1024 * 1024     # in + out resident budget for the fused path
_TILE_BYTES = 4 * 1024 * 1024       # per-block bytes for the tiled path
_CHUNK_ROWS = 256                   # in-kernel streaming chunk (multiple of 32)


def _sum_all(x):
    # (r, 128) -> (1, 1): lane reduce (XLU) then sublane reduce.
    return jnp.sum(jnp.sum(x, axis=1, keepdims=True), axis=0, keepdims=True)


# --------------------------------------------------------------------------- #
# Fused kernel: global mean/std + quantization in a single VMEM-resident pass #
# --------------------------------------------------------------------------- #
def _fused_kernel(alpha_ref, w_ref, o_ref, *, levels, n_valid, chunk_rows):
    rows, lanes = w_ref.shape
    n_pad = rows * lanes - n_valid            # zero-padded tail elements (static)
    full = rows // chunk_rows                 # static
    rem = rows - full * chunk_rows            # static

    def chunk_f32(start, size):
        return w_ref[pl.ds(start, size), :].astype(jnp.float32)

    zero = jnp.zeros((1, 1), jnp.float32)

    # ---- pass 1: global sum -> mean (zeros in the pad contribute nothing) ----
    def _sum_body(i, acc):
        start = pl.multiple_of(i * chunk_rows, 8)
        return acc + _sum_all(chunk_f32(start, chunk_rows))

    total = lax.fori_loop(0, full, _sum_body, zero) if full > 0 else zero
    if rem > 0:
        total = total + _sum_all(chunk_f32(full * chunk_rows, rem))
    mean = total * (1.0 / n_valid)                               # (1, 1)

    # ---- pass 2: centered sum of squares -> unbiased std (matches torch) ----
    def _ssd_body(i, acc):
        start = pl.multiple_of(i * chunk_rows, 8)
        d = chunk_f32(start, chunk_rows) - mean
        return acc + _sum_all(d * d)

    ssd = lax.fori_loop(0, full, _ssd_body, zero) if full > 0 else zero
    if rem > 0:
        d = chunk_f32(full * chunk_rows, rem) - mean
        ssd = ssd + _sum_all(d * d)
    if n_pad > 0:
        # each zero-padded element contributed (0 - mean)^2 = mean^2; remove it.
        ssd = ssd - float(n_pad) * (mean * mean)
    inv_nm1 = 1.0 / (n_valid - 1) if n_valid > 1 else float("nan")
    std = jnp.sqrt(ssd * inv_nm1)                                # (1, 1)

    # ---- pass 3: quantize (levels folded; round-half-to-even is odd-symm.) ---
    alpha = alpha_ref[0]
    inv_scale_l = levels / (std * alpha)                         # (1, 1)
    post_scale = alpha * (1.0 / levels)                          # scalar

    def _quant_store(start, size):
        x = (chunk_f32(start, size) - mean) * inv_scale_l
        xc = jnp.clip(x, -levels, levels)
        o_ref[pl.ds(start, size), :] = (jnp.round(xc) * post_scale).astype(o_ref.dtype)

    if full > 0:
        @pl.loop(0, full)
        def _(i):
            _quant_store(pl.multiple_of(i * chunk_rows, 8), chunk_rows)
    if rem > 0:
        _quant_store(full * chunk_rows, rem)


# --------------------------------------------------------------------------- #
# Tiled kernel: precomputed per-tensor scalars, streaming elementwise quantize #
# --------------------------------------------------------------------------- #
def _tiled_quant_kernel(scalars_ref, w_ref, o_ref, *, levels):
    mean = scalars_ref[0]
    inv_scale_l = scalars_ref[1]     # levels / (std * alpha)
    post_scale = scalars_ref[2]      # alpha / levels
    x = (w_ref[...].astype(jnp.float32) - mean) * inv_scale_l
    xc = jnp.clip(x, -levels, levels)
    o_ref[...] = (jnp.round(xc) * post_scale).astype(o_ref.dtype)


# --------------------------------------------------------------------------- #
# Wrapper                                                                      #
# --------------------------------------------------------------------------- #
@functools.partial(jax.jit, static_argnames=("bit_w", "force_tiled", "tile_rows"))
def weight_quantize_fn(weight, w_alpha, *, bit_w, force_tiled=False, tile_rows=None):
    """Pallas equivalent of weight_quantize_fn.forward(weight)."""
    assert bit_w > 1
    levels = float(2 ** (bit_w - 1) - 1)

    orig_shape = weight.shape
    orig_dtype = weight.dtype
    n = int(weight.size)
    itemsize = jnp.dtype(orig_dtype).itemsize
    alpha_s = jnp.asarray(w_alpha, jnp.float32)

    # Lane-dense flat view; reshape of a contiguous array is free.  Padding is
    # only needed when n is not a multiple of 128 (rare for conv weights).
    pad = (-n) % _LANE
    flat = weight.reshape(-1)
    if pad:
        flat = jnp.pad(flat, (0, pad))
    rows = (n + pad) // _LANE
    w2d = flat.reshape(rows, _LANE)

    resident_bytes = 2 * rows * _LANE * itemsize   # in + out, single-buffered

    if (not force_tiled) and resident_bytes <= _FUSED_BYTES:
        # --- single fused pass: stats + quantization, 1 HBM read + 1 write ----
        kernel = functools.partial(_fused_kernel, levels=levels, n_valid=n,
                                   chunk_rows=_CHUNK_ROWS)
        out2d = pl.pallas_call(
            kernel,
            out_shape=jax.ShapeDtypeStruct((rows, _LANE), orig_dtype),
            in_specs=[
                pl.BlockSpec(memory_space=pltpu.MemorySpace.SMEM),   # alpha (1,)
                pl.BlockSpec(memory_space=pltpu.MemorySpace.VMEM),   # weight slab
            ],
            out_specs=pl.BlockSpec(memory_space=pltpu.MemorySpace.VMEM),
            compiler_params=pltpu.CompilerParams(vmem_limit_bytes=_VMEM_LIMIT),
            cost_estimate=pl.CostEstimate(
                flops=9 * rows * _LANE, transcendentals=0,
                bytes_accessed=2 * rows * _LANE * itemsize),
        )(alpha_s.reshape(1), w2d)
    else:
        # --- large weights: exact two-pass stats outside, tiled quantize ------
        w32 = weight.reshape(-1).astype(jnp.float32)
        mean = jnp.mean(w32)
        var = jnp.sum((w32 - mean) ** 2) / (n - 1)                 # unbiased
        std = jnp.sqrt(var)
        scalars = jnp.stack(
            [mean, levels / (std * alpha_s), alpha_s / levels]).astype(jnp.float32)

        if tile_rows is None:
            tile_rows = max(32, (_TILE_BYTES // (_LANE * itemsize)) // 32 * 32)
        r_tile = min(int(tile_rows), rows)
        grid = (pl.cdiv(rows, r_tile),)       # ragged last block handled by Pallas

        kernel = functools.partial(_tiled_quant_kernel, levels=levels)
        out2d = pl.pallas_call(
            kernel,
            out_shape=jax.ShapeDtypeStruct((rows, _LANE), orig_dtype),
            grid=grid,
            in_specs=[
                pl.BlockSpec(memory_space=pltpu.MemorySpace.SMEM),   # (3,) scalars
                pl.BlockSpec((r_tile, _LANE), lambda i: (i, 0)),
            ],
            out_specs=pl.BlockSpec((r_tile, _LANE), lambda i: (i, 0)),
            compiler_params=pltpu.CompilerParams(
                dimension_semantics=("parallel",),
                vmem_limit_bytes=_VMEM_LIMIT),
            cost_estimate=pl.CostEstimate(
                flops=6 * rows * _LANE, transcendentals=0,
                bytes_accessed=2 * rows * _LANE * itemsize),
        )(scalars, w2d)

    out_flat = out2d.reshape(-1)
    if pad:
        out_flat = out_flat[:n]
    return out_flat.reshape(orig_shape)


# --------------------------------------------------------------------------- #
# Pure-JAX reference mirroring the PyTorch forward                             #
# --------------------------------------------------------------------------- #
def _reference(weight, w_alpha, bit_w):
    b = bit_w - 1
    levels = 2.0 ** b - 1.0
    w = weight.astype(jnp.float32)
    mean = jnp.mean(w)
    std = jnp.std(w, ddof=1)
    wn = (w - mean) / std
    x = wn / w_alpha
    xc = jnp.clip(x, -1.0, 1.0)
    sign = jnp.sign(xc)
    xq = jnp.round(jnp.abs(xc) * levels) / levels
    return (xq * sign * w_alpha).astype(weight.dtype)


def _check(out, ref, w_alpha, bit_w, name):
    step = float(w_alpha) / (2.0 ** (bit_w - 1) - 1.0)
    diff = jnp.abs(out.astype(jnp.float32) - ref.astype(jnp.float32))
    # Every element within one quantization step (allows the rare +-1-level
    # flip at an exact rounding boundary caused by benign fp reassociation) ...
    assert bool(jnp.all(diff <= step + 1e-4)), name
    # ... and the average error must be tiny (catches any systematic bug).
    assert float(jnp.mean(diff)) <= step * 1e-2, name


if __name__ == "__main__":
    bit_w = 4       # module __init__ arg; internal b = bit_w - 1 = 3 -> 7 levels
    w_alpha = 3.0   # Parameter(torch.tensor(3.0)) initialization
    k0, k1 = jax.random.split(jax.random.PRNGKey(0))

    # 1) Small OIHW conv weight -> fused path with a (rare) padded tail.
    w_small = jax.random.normal(k0, (8, 4, 3, 3), dtype=jnp.float32)
    out_small = jax.block_until_ready(weight_quantize_fn(w_small, w_alpha, bit_w=bit_w))
    ref_small = _reference(w_small, w_alpha, bit_w)
    assert out_small.shape == w_small.shape and out_small.dtype == w_small.dtype
    _check(out_small, ref_small, w_alpha, bit_w, "fused-padded")

    # 2) Conv weight with n % 128 == 0 -> fused path, no pad, chunked loops.
    w_mid = jax.random.normal(k1, (64, 64, 3, 3), dtype=jnp.float32)
    out_mid = jax.block_until_ready(weight_quantize_fn(w_mid, w_alpha, bit_w=bit_w))
    ref_mid = _reference(w_mid, w_alpha, bit_w)
    assert out_mid.shape == w_mid.shape and out_mid.dtype == w_mid.dtype
    _check(out_mid, ref_mid, w_alpha, bit_w, "fused")

    # 3) Same weight forced through the tiled (large-weight) path, including a
    #    ragged last block, to exercise that code path at a small size.
    out_tiled = jax.block_until_ready(
        weight_quantize_fn(w_mid, w_alpha, bit_w=bit_w, force_tiled=True, tile_rows=64))
    _check(out_tiled, ref_mid, w_alpha, bit_w, "tiled")

    print("KERNEL_OK")
</pallas_src>

<mosaic_0001>
module attributes {stable_mosaic.version = 11 : i64} {
  func.func @_fused_kernel(%arg0: memref<1xf32, #tpu.memory_space<smem>>, %arg1: memref<3x128xf32, #tpu.memory_space<vmem>>, %arg2: memref<3x128xf32, #tpu.memory_space<vmem>>) attributes {dimension_semantics = [], scalar_prefetch = 0 : i64, scratch_operands = 0 : i64, tpu.core_type = #tpu.core_type<tc>} {
    %cst = arith.constant 0.000000e+00 : f32
    %0 = vector.broadcast %cst : f32 to vector<1x1xf32>
    %c0 = arith.constant 0 : index
    %c0_0 = arith.constant 0 : index
    %1 = vector.load %arg1[%c0, %c0_0] : memref<3x128xf32, #tpu.memory_space<vmem>>, vector<3x128xf32>
    %cst_1 = arith.constant dense<0.000000e+00> : vector<3xf32>
    %2 = vector.multi_reduction <add>, %1, %cst_1 [1] : vector<3x128xf32> to vector<3xf32>
    %3 = vector.shape_cast %2 : vector<3xf32> to vector<3x1xf32>
    %cst_2 = arith.constant dense<0.000000e+00> : vector<1xf32>
    %4 = vector.multi_reduction <add>, %3, %cst_2 [0] : vector<3x1xf32> to vector<1xf32>
    %5 = vector.shape_cast %4 : vector<1xf32> to vector<1x1xf32>
    %6 = arith.addf %0, %5 : vector<1x1xf32>
    %cst_3 = arith.constant 0.00347222225 : f32
    %7 = vector.broadcast %cst_3 : f32 to vector<1x1xf32>
    %8 = arith.mulf %6, %7 : vector<1x1xf32>
    %c0_4 = arith.constant 0 : index
    %c0_5 = arith.constant 0 : index
    %9 = vector.load %arg1[%c0_4, %c0_5] : memref<3x128xf32, #tpu.memory_space<vmem>>, vector<3x128xf32>
    %10 = vector.broadcast %8 : vector<1x1xf32> to vector<3x128xf32>
    %11 = arith.subf %9, %10 : vector<3x128xf32>
    %12 = arith.mulf %11, %11 : vector<3x128xf32>
    %cst_6 = arith.constant dense<0.000000e+00> : vector<3xf32>
    %13 = vector.multi_reduction <add>, %12, %cst_6 [1] : vector<3x128xf32> to vector<3xf32>
    %14 = vector.shape_cast %13 : vector<3xf32> to vector<3x1xf32>
    %cst_7 = arith.constant dense<0.000000e+00> : vector<1xf32>
    %15 = vector.multi_reduction <add>, %14, %cst_7 [0] : vector<3x1xf32> to vector<1xf32>
    %16 = vector.shape_cast %15 : vector<1xf32> to vector<1x1xf32>
    %17 = arith.addf %0, %16 : vector<1x1xf32>
    %18 = arith.mulf %8, %8 : vector<1x1xf32>
    %cst_8 = arith.constant 9.600000e+01 : f32
    %19 = vector.broadcast %cst_8 : f32 to vector<1x1xf32>
    %20 = arith.mulf %19, %18 : vector<1x1xf32>
    %21 = arith.subf %17, %20 : vector<1x1xf32>
    %cst_9 = arith.constant 0.00348432059 : f32
    %22 = vector.broadcast %cst_9 : f32 to vector<1x1xf32>
    %23 = arith.mulf %21, %22 : vector<1x1xf32>
    %24 = math.sqrt %23 : vector<1x1xf32>
    %c0_10 = arith.constant 0 : index
    %25 = memref.load %arg0[%c0_10] : memref<1xf32, #tpu.memory_space<smem>>
    %26 = vector.broadcast %25 : f32 to vector<1x1xf32>
    %27 = arith.mulf %24, %26 : vector<1x1xf32>
    %cst_11 = arith.constant 7.000000e+00 : f32
    %28 = vector.broadcast %cst_11 : f32 to vector<1x1xf32>
    %29 = arith.divf %28, %27 : vector<1x1xf32>
    %cst_12 = arith.constant 0.142857149 : f32
    %30 = arith.mulf %25, %cst_12 : f32
    %c0_13 = arith.constant 0 : index
    %c0_14 = arith.constant 0 : index
    %31 = vector.load %arg1[%c0_13, %c0_14] : memref<3x128xf32, #tpu.memory_space<vmem>>, vector<3x128xf32>
    %32 = vector.broadcast %8 : vector<1x1xf32> to vector<3x128xf32>
    %33 = arith.subf %31, %32 : vector<3x128xf32>
    %34 = vector.broadcast %29 : vector<1x1xf32> to vector<3x128xf32>
    %35 = arith.mulf %33, %34 : vector<3x128xf32>
    %cst_15 = arith.constant -7.000000e+00 : f32
    %cst_16 = arith.constant 7.000000e+00 : f32
    %36 = vector.broadcast %cst_15 : f32 to vector<3x128xf32>
    %37 = arith.maximumf %36, %35 : vector<3x128xf32>
    %38 = vector.broadcast %cst_16 : f32 to vector<3x128xf32>
    %39 = arith.minimumf %38, %37 : vector<3x128xf32>
    %40 = math.roundeven %39 : vector<3x128xf32>
    %41 = vector.broadcast %30 : f32 to vector<3x128xf32>
    %42 = arith.mulf %40, %41 : vector<3x128xf32>
    %c0_17 = arith.constant 0 : index
    %c0_18 = arith.constant 0 : index
    %43 = vector.load %arg2[%c0_17, %c0_18] : memref<3x128xf32, #tpu.memory_space<vmem>>, vector<3x128xf32>
    tpu.vector_store %arg2[%c0_17, %c0_18], %42 {strides = array<i32>} : memref<3x128xf32, #tpu.memory_space<vmem>>, vector<3x128xf32>,
    return
  }
}

</mosaic_0001>

<llo_original>
// kernel: weight_quantize_fn.1
$region0: #{weight_quantize_fn.1}
  #allocation0 [shape = 'u32[]', space=smem, size = 0x4, offset = 0x4, fixed_abs, tag = 'smem constant byte address 0x4 - core index']
  #allocation1 [shape = 'u32[144,128]{1,0:T(1,128)}', space=vmem, size = 0x12000, scoped, tag = 'internal scratch']
  #allocation2 [shape = 'f32[1]{0:T(128)S(6)}', space=smem, size = 0x200, scoped, tag = 'scoped memory for weight_quantize_fn.1']
  %s0 = inlined_call_operand.<no memory space> [shape: f32[1], index: 0, kind: input, shape index: {}]
  %s1 = inlined_call_operand.vmem [shape: f32[3,128], index: 1, kind: input, shape index: {}]
  %s2 = inlined_call_operand.vmem [shape: f32[3,128], index: 2, kind: output, shape index: {}]
  %s3 = sld [smem:[#allocation0]]
  $region18: #{weight_quantize_fn.1} parent=0
    _
  %s5 = ssub.s32 1, %s3
  %s6 = scalar_select 0, %s5, %s3
  %7 = sst [smem:[#allocation2]] %s0
  // Predicated region
  $region2: #{weight_quantize_fn.1} parent=0 // pred_check
    _
  $region3: #{weight_quantize_fn.1} parent=0 // pred_check_branch
    %9 = sbr.rel (0) target = $region5
  $region4: #{weight_quantize_fn.1} parent=0 // pred_region
    _
  $region5: #{weight_quantize_fn.1} parent=0 // pred_fallthru
    _
  // Predicated region
  $region6: #{weight_quantize_fn.1} parent=0 // pred_check
    _
  $region7: #{weight_quantize_fn.1} parent=0 // pred_check_branch
    %11 = sbr.rel (0) target = $region9
  $region8: #{weight_quantize_fn.1} parent=0 // pred_region
    _
  $region9: #{weight_quantize_fn.1} parent=0 // pred_fallthru
    _
  %v12 = vld [vmem:[%s1] sm:$0x7]
  %vm13 = vcmask 1042432
  %v14 = vsel %vm13, %v12, 0.0
  %15 = vadd.xlane.f32.xlu0 %v14
  %v16 = vpop.xlane.xlu0 %15
  %v17 = vsel %vm13, %v16, 0.0
  %v18 = vrot.slane %v17, 4
  %v19 = vadd.f32 %v17, %v18
  %v20 = vrot.slane %v19, 2
  %v21 = vadd.f32 %v19, %v20
  %v22 = vrot.slane %v21, 1
  %v23 = vadd.f32 %v21, %v22
  %v24 = vadd.f32 %v23, 0.0
  %v25 = vmul.f32 %v24, 0.0034722222
  %v26 = vsub.f32 %v12, %v25
  %v27 = vmul.f32 %v26, %v26
  %v28 = vsel %vm13, %v27, 0.0
  %29 = vadd.xlane.f32.xlu0 %v28
  %v30 = vpop.xlane.xlu0 %29
  %v31 = vsel %vm13, %v30, 0.0
  %v32 = vrot.slane %v31, 4
  %v33 = vadd.f32 %v31, %v32
  %v34 = vrot.slane %v33, 2
  %v35 = vadd.f32 %v33, %v34
  %v36 = vrot.slane %v35, 1
  %v37 = vadd.f32 %v35, %v36
  %v38 = vadd.f32 %v37, 0.0
  %v39 = vmul.f32 %v25, %v25
  %v40 = vmul.f32 %v39, 96.0
  %v41 = vsub.f32 %v38, %v40
  %v42 = vmul.f32 %v41, 0.0034843206
  %v43 = vrsqrt.pop %v42
  %v44 = vmul.f32 %v42, %v43
  %vm45 = vcmp.eq.f32.partialorder %v42, inf
  %v46 = vsel %vm45, %v42, %v44
  %vm47 = vcmp.eq.f32.partialorder %v42, 0.0
  %v48 = vand.u32 %v42, 2147483648
  %v49 = vsel %vm47, %v48, %v46
  %s50 = sld [smem:[#allocation2]]
  %v51 = vstv %s50
  %v52 = vmul.f32 %v49, %v51
  %v53 = vrcp.pop %v52
  %v54 = vmul.f32 7.0, %v53
  %s55 = smul.f32 %s50, 0.14285715
  %v56 = vmul.f32 %v26, %v54
  %v57 = vmax.f32 %v56, -7.0
  %v58 = vmin.f32 %v57, 7.0
  %v59 = vround.ne.pseudo %v58
  %v60 = vstv %s55
  %v61 = vmul.f32 %v59, %v60
  %62 = vst [vmem:[%s2] sm:$0x7] %v61
  // Predicated region
  $region10: #{weight_quantize_fn.1} parent=0 // pred_check
    _
  $region11: #{weight_quantize_fn.1} parent=0 // pred_check_branch
    %64 = sbr.rel (0) target = $region13
  $region12: #{weight_quantize_fn.1} parent=0 // pred_region
    _
  $region13: #{weight_quantize_fn.1} parent=0 // pred_fallthru
    _
  // Predicated region
  $region14: #{weight_quantize_fn.1} parent=0 // pred_check
    _
  $region15: #{weight_quantize_fn.1} parent=0 // pred_check_branch
    %66 = sbr.rel (0) target = $region17
  $region16: #{weight_quantize_fn.1} parent=0 // pred_region
    _
  $region17: #{weight_quantize_fn.1} parent=0 // pred_fallthru
    _

</llo_original>
